<compile_context>
chip_gen: v7x
topology: tpu7x:2x2x1
jax: 0.10.0
libtpu: 0.0.40
codegen_flags: <defaults>
</compile_context>

<pallas_src>
import jax
import jax.numpy as jnp
from jax import lax
from jax.experimental import pallas as pl
from jax.experimental.pallas import tpu as pltpu


def _round_up(x, m):
    return ((x + m - 1) // m) * m


def _vmem_capacity_bytes():
    try:
        info = pltpu.get_tpu_info()
        cap = getattr(info, "vmem_capacity_bytes", None)
        if cap:
            return int(cap)
    except Exception:
        pass
    return 64 * 1024 * 1024  # conservative: v7x per-TensorCore VMEM


def _maybe_single_buffered(block_shape, index_map):
    """BlockSpec with single buffering (block index is constant across the
    grid); falls back to a default BlockSpec if Buffered isn't available."""
    try:
        return pl.BlockSpec(block_shape, index_map, pipeline_mode=pl.Buffered(1))
    except Exception:
        return pl.BlockSpec(block_shape, index_map)


# ----------------------------------------------------------------------------
# Kernel: one (row, col) tile of  tanh(x @ W.T + b)
#   x_ref : (TB, H)   w_ref : (TN, H)   b_ref : (1, TN)   o_ref : (TB, TN)
# ----------------------------------------------------------------------------
def pooler_kernel(x_ref, w_ref, b_ref, o_ref):
    x = x_ref[...].astype(w_ref.dtype)          # bf16 x bf16 MXU pass
    acc = lax.dot_general(                      # x @ W.T (contract last dims)
        x, w_ref[...],
        dimension_numbers=(((1,), (1,)), ((), ())),
        preferred_element_type=jnp.float32)
    acc = acc + b_ref[...].astype(jnp.float32)  # bias add in f32
    o_ref[...] = jnp.tanh(acc).astype(o_ref.dtype)


# ----------------------------------------------------------------------------
# Wrapper
# ----------------------------------------------------------------------------
def align_text_pooler(hidden_states, weight, bias, *, block_rows=512):
    """AlignTextPooler forward.

    hidden_states: (B, S, H). weight: (H, H) in PyTorch Linear layout
    (y = x @ W.T + b), any float dtype (bf16 recommended, cast once at
    parameter-load time). bias: (H,). Returns (B, H) in hidden_states.dtype.
    """
    b, s, h = hidden_states.shape
    assert weight.shape == (h, h)
    assert bias.shape == (h,)

    # First-token extraction (cheap strided read; only B*H elements touched).
    x0 = hidden_states[:, 0, :]                 # (B, H)
    b2d = bias.reshape(1, h)                    # (1, H) for 2-D VMEM layout

    x_it = jnp.dtype(hidden_states.dtype).itemsize
    w_it = jnp.dtype(weight.dtype).itemsize
    b_it = jnp.dtype(bias.dtype).itemsize
    o_it = x_it

    cap = _vmem_capacity_bytes()
    budget = max(cap // 2, 32 * 1024 * 1024)

    # Output-column tile: keep the whole weight resident (single buffer) when
    # it fits half the budget, otherwise tile its output rows in multiples of
    # 256 (MXU-friendly, lane-dense stores).
    if h <= 256 or h * h * w_it <= budget // 2:
        tn = h
    else:
        tn = ((budget // 4) // (h * w_it)) // 256 * 256
        tn = int(min(max(tn, 256), h))
    n_cols = pl.cdiv(h, tn)

    const_wb = (tn == h)          # weight/bias block index never changes
    w_bufs = 1 if const_wb else 2

    # Row tile: VMEM-bounded, multiple of 8, and split so a 2-TC chip (v7x)
    # gets >= 2 grid steps when the batch is big enough.
    remaining = budget - w_bufs * (h * tn * w_it + tn * b_it)
    per_row = 2 * (h * x_it + tn * o_it)        # double-buffered x + out
    tb_cap = max(8, (remaining // per_row) // 8 * 8)
    tb = int(min(block_rows, tb_cap))
    if b <= tb:
        tb = _round_up(pl.cdiv(b, 2), 8) if b >= 16 else b
    n_rows = pl.cdiv(b, tb)

    grid = (n_rows, n_cols)

    if const_wb:
        w_spec = _maybe_single_buffered((tn, h), lambda i, j: (j, 0))
        b_spec = _maybe_single_buffered((1, tn), lambda i, j: (0, j))
    else:
        w_spec = pl.BlockSpec((tn, h), lambda i, j: (j, 0))
        b_spec = pl.BlockSpec((1, tn), lambda i, j: (0, j))

    vmem_need = (2 * tb * h * x_it + 2 * tb * tn * o_it
                 + w_bufs * (h * tn * w_it + tn * b_it))
    vmem_limit = int(min(cap, max(vmem_need + (4 << 20), 32 << 20)))

    cost = pl.CostEstimate(
        flops=2 * b * h * h,
        transcendentals=b * h,
        bytes_accessed=(b * h * x_it + h * h * w_it + h * b_it + b * h * o_it),
    )

    return pl.pallas_call(
        pooler_kernel,
        out_shape=jax.ShapeDtypeStruct((b, h), hidden_states.dtype),
        grid=grid,
        in_specs=[
            pl.BlockSpec((tb, h), lambda i, j: (i, 0)),   # x row tile
            w_spec,                                       # W output-row tile
            b_spec,                                       # bias slice
        ],
        out_specs=pl.BlockSpec((tb, tn), lambda i, j: (i, j)),
        compiler_params=pltpu.CompilerParams(
            dimension_semantics=("parallel", "parallel"),
            vmem_limit_bytes=vmem_limit),
        cost_estimate=cost,
    )(x0, weight, b2d)


# ----------------------------------------------------------------------------
# Pure-JAX reference (mirrors the PyTorch module) for verification.
# ----------------------------------------------------------------------------
def reference(hidden_states, weight, bias):
    x0 = hidden_states[:, 0, :]
    return jnp.tanh(x0 @ weight.T + bias)


if __name__ == "__main__":
    # Small config consistent with the module: batch=2, seq=8, hidden=32
    B, S, H = 2, 8, 32

    key = jax.random.PRNGKey(0)
    k0, k1, k2 = jax.random.split(key, 3)
    hidden_states = jax.random.normal(k0, (B, S, H), jnp.float32)
    weight = jax.random.normal(k1, (H, H), jnp.float32) * 0.05
    bias = jax.random.normal(k2, (H,), jnp.float32) * 0.05

    # One-time parameter preparation (do this at parameter-load time, NOT per
    # step): store the Linear weight in bf16; the kernel accumulates in f32.
    weight_bf16 = weight.astype(jnp.bfloat16)

    out = align_text_pooler(hidden_states, weight_bf16, bias)
    out = jax.block_until_ready(out)

    ref = reference(hidden_states, weight, bias)

    assert out.shape == (B, H)
    # Loose tolerance accounts for the bf16 weight/activation cast.
    assert jnp.allclose(out, ref, atol=1e-2, rtol=1e-2)

    print("KERNEL_OK")
</pallas_src>

<mosaic_0001>
module attributes {stable_mosaic.version = 11 : i64} {
  func.func @pooler_kernel(%arg0: i32, %arg1: i32, %arg2: memref<2x32xf32, #tpu.memory_space<vmem>>, %arg3: memref<32x32xbf16, #tpu.memory_space<vmem>>, %arg4: memref<1x32xf32, #tpu.memory_space<vmem>>, %arg5: memref<2x32xf32, #tpu.memory_space<vmem>>) attributes {dimension_semantics = [#tpu.dimension_semantics<parallel>, #tpu.dimension_semantics<parallel>], iteration_bounds = array<i64: 1, 1>, scalar_prefetch = 0 : i64, scratch_operands = 0 : i64, tpu.core_type = #tpu.core_type<tc>, window_params = [{transform_indices = @transform_0, window_bounds = array<i64: 2, 32>}, {pipeline_mode = #tpu.pipeline_mode<synchronous>, transform_indices = @transform_1, window_bounds = array<i64: 32, 32>}, {pipeline_mode = #tpu.pipeline_mode<synchronous>, transform_indices = @transform_2, window_bounds = array<i64: 1, 32>}, {transform_indices = @transform_3, window_bounds = array<i64: 2, 32>}]} {
    %c0 = arith.constant 0 : index
    %c0_0 = arith.constant 0 : index
    %0 = vector.load %arg2[%c0, %c0_0] : memref<2x32xf32, #tpu.memory_space<vmem>>, vector<2x32xf32>
    %1 = arith.truncf %0 : vector<2x32xf32> to vector<2x32xbf16>
    %c0_1 = arith.constant 0 : index
    %c0_2 = arith.constant 0 : index
    %2 = vector.load %arg3[%c0_1, %c0_2] : memref<32x32xbf16, #tpu.memory_space<vmem>>, vector<32x32xbf16>
    %cst = arith.constant dense<0.000000e+00> : vector<2x32xf32>
    %3 = tpu.matmul %1, %2, %cst {dimension_numbers = #tpu.dot_dimension_numbers<[1], [1], [0], [0], [0, 0, 1, 0], [], []>} : vector<2x32xbf16>, vector<32x32xbf16>, vector<2x32xf32> -> vector<2x32xf32>
    %c0_3 = arith.constant 0 : index
    %c0_4 = arith.constant 0 : index
    %4 = vector.load %arg4[%c0_3, %c0_4] : memref<1x32xf32, #tpu.memory_space<vmem>>, vector<1x32xf32>
    %5 = vector.broadcast %4 : vector<1x32xf32> to vector<2x32xf32>
    %6 = arith.addf %3, %5 : vector<2x32xf32>
    %7 = math.tanh %6 : vector<2x32xf32>
    %c0_5 = arith.constant 0 : index
    %c0_6 = arith.constant 0 : index
    %8 = vector.load %arg5[%c0_5, %c0_6] : memref<2x32xf32, #tpu.memory_space<vmem>>, vector<2x32xf32>
    tpu.vector_store %arg5[%c0_5, %c0_6], %7 {strides = array<i32>} : memref<2x32xf32, #tpu.memory_space<vmem>>, vector<2x32xf32>,
    return
  }
  func.func @transform_0(%arg0: i32, %arg1: i32) -> (i32, i32) {
    %c0_i32 = arith.constant 0 : i32
    %c0_i32_0 = arith.constant 0 : i32
    return %arg0, %c0_i32 : i32, i32
  }
  func.func @transform_1(%arg0: i32, %arg1: i32) -> (i32, i32) {
    %c0_i32 = arith.constant 0 : i32
    %c0_i32_0 = arith.constant 0 : i32
    return %arg1, %c0_i32 : i32, i32
  }
  func.func @transform_2(%arg0: i32, %arg1: i32) -> (i32, i32) {
    %c0_i32 = arith.constant 0 : i32
    %c0_i32_0 = arith.constant 0 : i32
    return %c0_i32, %arg1 : i32, i32
  }
  func.func @transform_3(%arg0: i32, %arg1: i32) -> (i32, i32) {
    %c0_i32 = arith.constant 0 : i32
    return %arg0, %arg1 : i32, i32
  }
}

</mosaic_0001>

<llo_original>
// kernel: tpu_custom_call.1
$region0: #{tpu_custom_call.1}
  #allocation0 [shape = 'u32[]', space=smem, size = 0x4, offset = 0x4, fixed_abs, tag = 'smem constant byte address 0x4 - core index']
  #allocation1 [shape = 'u32[144,128]{1,0:T(1,128)}', space=vmem, size = 0x12000, scoped, tag = 'internal scratch']
  %s0 = inlined_call_operand.hbm [shape: f32[2,32], index: 0, kind: input, shape index: {}]
  %s1 = inlined_call_operand.hbm [shape: bf16[32,32], index: 1, kind: input, shape index: {}]
  %s2 = inlined_call_operand.vmem [shape: f32[1,32], index: 2, kind: input, shape index: {}]
  %s3 = inlined_call_operand.hbm [shape: f32[2,32], index: 3, kind: output, shape index: {}]
  %s4 = sld [smem:[#allocation0]]
  $region30: #{tpu_custom_call.1} parent=0
    _
  %s6 = ssub.s32 1, %s4
  %s7 = scalar_select 0, %s6, %s4
  $region1: #{tpu_custom_call.1} parent=0
    #allocation2 [shape = 'u8[1024]{0}', space=vmem, size = 0x400, scoped, tag = 'input window, operand 0, single buffered']
    #allocation3 [shape = 's32[1]{0}', space=sflag, size = 0x4, scoped, tag = 'scoped memory for tpu_custom_call.1']
    #allocation4 [shape = 's32[1]{0}', space=sflag, size = 0x4, scoped, tag = 'scoped memory for tpu_custom_call.1']
    #allocation5 [shape = 'u8[8192]{0}', space=vmem, size = 0x2000, scoped, tag = 'input window, operand 1, single buffered']
    #allocation6 [shape = 's32[1]{0}', space=sflag, size = 0x4, scoped, tag = 'scoped memory for tpu_custom_call.1']
    #allocation7 [shape = 'u8[1024]{0}', space=vmem, size = 0x400, scoped, tag = 'output window, operand 0, single buffered']
    %8 = vsyncpa [#allocation3], 0
    %9 = vsyncpa [#allocation6], 0
    %10 = vsyncpa [#allocation4], 0
    // Predicated region
    $region2: #{tpu_custom_call.1} parent=1 // pred_check
      _
    $region3: #{tpu_custom_call.1} parent=1 // pred_check_branch
      %12 = sbr.rel (0) target = $region5
    $region4: #{tpu_custom_call.1} parent=1 // pred_region
      %s14 = ssub.s32 32, 32
      %15 = vsyncadd [#allocation3], %s14
      %s17 = sshll.u32 [#allocation2], 4
      %s18 = int_to_ptr.vmem [resolvable:$true] %s17
      %20 = dma.hbm_to_vmem [thread:$0]  %s0, 32, %s18, [#allocation3]
    $region5: #{tpu_custom_call.1} parent=1 // pred_fallthru
      _
    // Predicated region
    $region6: #{tpu_custom_call.1} parent=1 // pred_check
      _
    $region7: #{tpu_custom_call.1} parent=1 // pred_check_branch
      %22 = sbr.rel (0) target = $region9
    $region8: #{tpu_custom_call.1} parent=1 // pred_region
      %s24 = ssub.s32 256, 256
      %25 = vsyncadd [#allocation6], %s24
      %s26 = sshll.u32 [#allocation5], 4
      %s27 = int_to_ptr.vmem [resolvable:$true] %s26
      %32 = dma.hbm_to_vmem [thread:$0]  %s1, 256, %s27, [#allocation6], 64, 64, 4
    $region9: #{tpu_custom_call.1} parent=1 // pred_fallthru
      _
    // Predicated region
    $region10: #{tpu_custom_call.1} parent=1 // pred_check
      _
    $region11: #{tpu_custom_call.1} parent=1 // pred_check_branch
      %34 = sbr.rel (0) target = $region13
    $region12: #{tpu_custom_call.1} parent=1 // pred_region
      _
    $region13: #{tpu_custom_call.1} parent=1 // pred_fallthru
      _
    // Predicated region
    $region14: #{tpu_custom_call.1} parent=1 // pred_check
      _
    $region15: #{tpu_custom_call.1} parent=1 // pred_check_branch
      %36 = sbr.rel (0) target = $region17
    $region16: #{tpu_custom_call.1} parent=1 // pred_region
      %37 = dma.done [#allocation3], 32
    $region17: #{tpu_custom_call.1} parent=1 // pred_fallthru
      _
    // Predicated region
    $region18: #{tpu_custom_call.1} parent=1 // pred_check
      _
    $region19: #{tpu_custom_call.1} parent=1 // pred_check_branch
      %39 = sbr.rel (0) target = $region21
    $region20: #{tpu_custom_call.1} parent=1 // pred_region
      %40 = dma.done [#allocation6], 256
    $region21: #{tpu_custom_call.1} parent=1 // pred_fallthru
      _
    %v42 = vld [vmem:[#allocation2] sm:$0x3]
    %v43 = vpack.c.bf16 %v42, %v42
    %v44 = vld [vmem:[#allocation5] sm:$0xf]
    %v45 = vld [vmem:[#allocation5 + $0x4] sm:$0xf]
    %v46 = vld [vmem:[#allocation5 + $0x8] sm:$0xf]
    %v47 = vld [vmem:[#allocation5 + $0xc] sm:$0xf]
    %v48 = vld [vmem:[%s2] sm:$0x1]
    %v50 = vlaneseq
    %v51 = vshrl.u32 %v50, 7
    %v52 = vsub.s32 0, %v51
    %v53 = vrot.slane %v48, %v52
    %v59 = vunpack.c.l.b16 %v44
    %v60 = vunpack.c.l.b16 %v45
    %v61 = vunpack.c.l.b16 %v46
    %v62 = vunpack.c.l.b16 %v47
    %v63 = vpack.c.b16 %v60, %v59
    %v64 = vpack.c.b16 %v62, %v61
    %vm65 = vcmask 261120
    %v67 = vsel %vm65, %v43, 0
    %v70 = vsel %vm65, %v63, 0
    %v73 = vsel %vm65, %v64, 0
    %75 = vmatprep.subr.bf16.mxu0 0
    %76 = vmatpush1.bf16.xpose.msra.mxu0 %v70
    %77 = vmatprep.subr.bf16.mxu0 0
    %78 = vmatpush1.bf16.xpose.msra.mxu0 %v73
    %79 = vmatprep.subr.bf16.mxu0 0
    %80 = vmatpush1.bf16.xpose.msra.mxu0 0
    %81 = vmatprep.subr.bf16.mxu0 0
    %82 = vmatpush1.bf16.xpose.msra.mxu0 0
    %83 = vmatprep.subr.bf16.mxu0 0
    %84 = vmatpush1.bf16.xpose.msra.mxu0 0
    %85 = vmatprep.subr.bf16.mxu0 0
    %86 = vmatpush1.bf16.xpose.msra.mxu0 0
    %87 = vmatprep.subr.bf16.mxu0 0
    %88 = vmatpush1.bf16.xpose.msra.mxu0 0
    %89 = vmatprep.subr.bf16.mxu0 0
    %90 = vmatpush1.bf16.xpose.msra.mxu0 0
    %91 = vmatprep.subr.bf16.mxu0 0
    %92 = vmatpush1.bf16.xpose.msra.mxu0 0
    %93 = vmatprep.subr.bf16.mxu0 0
    %94 = vmatpush1.bf16.xpose.msra.mxu0 0
    %95 = vmatprep.subr.bf16.mxu0 0
    %96 = vmatpush1.bf16.xpose.msra.mxu0 0
    %97 = vmatprep.subr.bf16.mxu0 0
    %98 = vmatpush1.bf16.xpose.msra.mxu0 0
    %99 = vmatprep.subr.bf16.mxu0 0
    %100 = vmatpush1.bf16.xpose.msra.mxu0 0
    %101 = vmatprep.subr.bf16.mxu0 0
    %102 = vmatpush1.bf16.xpose.msra.mxu0 0
    %103 = vmatprep.subr.bf16.mxu0 0
    %104 = vmatpush1.bf16.xpose.msra.mxu0 0
    %105 = vmatprep.subr.bf16.mxu0 0
    %106 = vmatpush1.bf16.xpose.msra.mxu0 0
    %107 = vmatprep.mubr.bf16.mxu0 0
    %108 = vmatmul.mubr.bf16.gmra.mrb[0].mxu0 %v67
    %v109 = vpop.f32.mrb[0].mxu0
    %v110 = vadd.f32 %v53, %v109
    %v111 = vpop.f32.mrb[0].mxu0
    %v112 = vpop.f32.mrb[0].mxu0
    %v113 = vpop.f32.mrb[0].mxu0
    %114 = vdwg.mxu0
    %v115 = vtanh.pop %v110
    %vm116 = vcmask 254976
    %117 = vst.msk [vmem:[#allocation7] sm:$0x3] %vm116, %v115
    // Predicated region
    $region22: #{tpu_custom_call.1} parent=1 // pred_check
      _
    $region23: #{tpu_custom_call.1} parent=1 // pred_check_branch
      %119 = sbr.rel (0) target = $region25
    $region24: #{tpu_custom_call.1} parent=1 // pred_region
      %s121 = ssub.s32 32, 32
      %122 = vsyncadd [#allocation4], %s121
      %s124 = sshll.u32 [#allocation7], 4
      %s125 = int_to_ptr.vmem [resolvable:$true] %s124
      %127 = dma.vmem_to_hbm [thread:$0]  %s125, 32, %s3, [#allocation4]
    $region25: #{tpu_custom_call.1} parent=1 // pred_fallthru
      _
    // Predicated region
    $region26: #{tpu_custom_call.1} parent=1 // pred_check
      _
    $region27: #{tpu_custom_call.1} parent=1 // pred_check_branch
      %129 = sbr.rel (0) target = $region29
    $region28: #{tpu_custom_call.1} parent=1 // pred_region
      %130 = dma.done [#allocation4], 32
    $region29: #{tpu_custom_call.1} parent=1 // pred_fallthru
      _
    %131 = vsyncpa [#allocation3], 1
    %132 = vsyncpa [#allocation6], 1
    %133 = vsyncpa [#allocation4], 1

</llo_original>
